<compile_context>
chip_gen: v5e
topology: v5e:2x2
jax: 0.10.0
libtpu: 0.0.40
codegen_flags: <defaults>
</compile_context>

<pallas_src>
import functools

import jax
import jax.numpy as jnp
from jax import lax
from jax.experimental import pallas as pl
from jax.experimental.pallas import tpu as pltpu


def _round_up(v, m):
    return (v + m - 1) // m * m


def _gru_fc_kernel(x_ref, h0_ref, wih_ref, whh_ref, bpre_ref, bhn_ref,
                   wfc_ref, bfc_ref, y_ref, hn_ref, gx_scr, hs_scr,
                   *, seq_len, bp, h_dim, unroll):
    gw = whh_ref.shape[1]          # packed gate width (>= 3*h_dim, lane mult.)

    # ---- preamble: input->hidden gate pre-activations for ALL timesteps ----
    # (S*Bp, I) @ (I, GW): no sequential dependency, one MXU call.  All
    # biases except b_hn are already folded into bpre.
    gx_scr[...] = (
        jnp.dot(x_ref[...], wih_ref[...], preferred_element_type=jnp.float32)
        + bpre_ref[...])

    whh = whh_ref[...]                                   # (H, GW), hoisted
    # b_hn lives only in the n-gate columns; broadcast once, outside the loop.
    bhn_b = jnp.broadcast_to(bhn_ref[...], (bp, gw))     # (Bp, GW)

    # ---- recurrence: one (Bp,H)x(H,GW) MXU pass + gate math per step -------
    def step(t, h):
        base = pl.multiple_of(t * bp, bp)                # aligned sublanes
        gx = gx_scr[pl.ds(base, bp), :]                  # (Bp, GW)
        gh = jnp.dot(h, whh, preferred_element_type=jnp.float32) + bhn_b
        # PyTorch gate order (r, z, n) packed along lanes [0:H,H:2H,2H:3H].
        rz = jax.nn.sigmoid(gx[:, :2 * h_dim] + gh[:, :2 * h_dim])
        r = rz[:, :h_dim]
        z = rz[:, h_dim:2 * h_dim]
        # gh's n-columns already contain b_hn, so r*(...) matches PyTorch:
        #   n = tanh(W_in x + b_in + r * (W_hn h + b_hn))
        n = jnp.tanh(gx[:, 2 * h_dim:3 * h_dim]
                     + r * gh[:, 2 * h_dim:3 * h_dim])
        h_new = (1.0 - z) * n + z * h
        hs_scr[pl.ds(base, bp), :] = h_new
        return h_new

    h_last = lax.fori_loop(0, seq_len, step, h0_ref[...], unroll=unroll)
    hn_ref[...] = h_last                                 # written once

    # ---- epilogue: one lane-dense fc matmul over all timesteps -------------
    y_ref[...] = (
        jnp.dot(hs_scr[...], wfc_ref[...], preferred_element_type=jnp.float32)
        + bfc_ref[...])


def prepare_params(w_ih, w_hh, b_ih, b_hh, w_fc, b_fc):
    """Pad/pack PyTorch-layout GRU + Linear weights ONCE (out of the per-call
    path).  w_ih: (3H,I), w_hh: (3H,H), b_*: (3H,), w_fc: (O,H), b_fc: (O,)."""
    f32 = jnp.float32
    H = w_hh.shape[1]
    I = w_ih.shape[1]
    O = w_fc.shape[0]
    GW = _round_up(3 * H, 128)     # single packed gate block (lane multiple)
    Op = _round_up(O, 128)         # lane-dense y store

    wih_p = jnp.zeros((I, GW), f32).at[:, :3 * H].set(w_ih.T.astype(f32))
    whh_p = jnp.zeros((H, GW), f32).at[:, :3 * H].set(w_hh.T.astype(f32))

    # Biases that sit OUTSIDE r*(...): b_ir+b_hr, b_iz+b_hz, b_in -> preamble.
    bpre = jnp.zeros((1, GW), f32)
    bpre = bpre.at[0, :2 * H].set((b_ih[:2 * H] + b_hh[:2 * H]).astype(f32))
    bpre = bpre.at[0, 2 * H:3 * H].set(b_ih[2 * H:3 * H].astype(f32))
    # b_hn must stay inside r*(...): keep it in the n-gate columns only.
    bhn = jnp.zeros((1, GW), f32).at[0, 2 * H:3 * H].set(
        b_hh[2 * H:3 * H].astype(f32))

    wfc_p = jnp.zeros((H, Op), f32).at[:, :O].set(w_fc.T.astype(f32))
    bfc_p = jnp.zeros((1, Op), f32).at[0, :O].set(b_fc.astype(f32))
    return dict(wih=wih_p, whh=whh_p, bpre=bpre, bhn=bhn,
                wfc=wfc_p, bfc=bfc_p)


@functools.partial(jax.jit, static_argnames=("output_size",))
def gru_fc_forward(x, h0, params, *, output_size):
    """x: (S,B,I), h0: (1,B,H); params from prepare_params()."""
    S, B, I = x.shape
    H = params["whh"].shape[0]
    GW = params["whh"].shape[1]
    Op = params["wfc"].shape[1]
    O = output_size
    Bp = _round_up(B, 8)           # full sublane group

    f32 = jnp.float32
    # Only x / h0 are padded per call (batch -> Bp rows, padding rows zero;
    # rows are independent so padded rows stay garbage-but-isolated).
    x_p = x.astype(f32)
    if Bp != B:
        x_p = jnp.pad(x_p, ((0, 0), (0, Bp - B), (0, 0)))
    x2d = x_p.reshape(S * Bp, I)
    h0_p = jnp.zeros((Bp, H), f32).at[:B].set(h0[0].astype(f32))

    unroll = True if S <= 32 else 8
    kernel = functools.partial(_gru_fc_kernel, seq_len=S, bp=Bp, h_dim=H,
                               unroll=unroll)

    grid_spec = pltpu.PrefetchScalarGridSpec(
        num_scalar_prefetch=0,
        grid=(1,),                                        # single invocation
        in_specs=[
            pl.BlockSpec((S * Bp, I), lambda i: (0, 0)),  # x (all steps)
            pl.BlockSpec((Bp, H), lambda i: (0, 0)),      # h0
            pl.BlockSpec((I, GW), lambda i: (0, 0)),      # W_ih^T packed
            pl.BlockSpec((H, GW), lambda i: (0, 0)),      # W_hh^T packed
            pl.BlockSpec((1, GW), lambda i: (0, 0)),      # folded biases
            pl.BlockSpec((1, GW), lambda i: (0, 0)),      # b_hn (n cols only)
            pl.BlockSpec((H, Op), lambda i: (0, 0)),      # W_fc^T
            pl.BlockSpec((1, Op), lambda i: (0, 0)),      # b_fc
        ],
        out_specs=[
            pl.BlockSpec((S * Bp, Op), lambda i: (0, 0)),  # y (all steps)
            pl.BlockSpec((Bp, H), lambda i: (0, 0)),       # h_n
        ],
        scratch_shapes=[
            pltpu.VMEM((S * Bp, GW), jnp.float32),         # gx, all steps
            pltpu.VMEM((S * Bp, H), jnp.float32),          # hidden states
        ],
    )
    # NOTE: scratch grows linearly with S; for very long sequences chunk the
    # preamble/epilogue over S (v7x VMEM is 64 MiB).  Fine at these shapes.

    y2d, hn_p = pl.pallas_call(
        kernel,
        out_shape=(
            jax.ShapeDtypeStruct((S * Bp, Op), jnp.float32),
            jax.ShapeDtypeStruct((Bp, H), jnp.float32),
        ),
        grid_spec=grid_spec,
        compiler_params=pltpu.CompilerParams(
            dimension_semantics=("arbitrary",)),
    )(x2d, h0_p, params["wih"], params["whh"], params["bpre"],
      params["bhn"], params["wfc"], params["bfc"])

    y = y2d.reshape(S, Bp, Op)[:, :B, :O]
    hn = hn_p[None, :B, :]
    return y, hn


def _reference_forward(x, h0, w_ih, w_hh, b_ih, b_hh, w_fc, b_fc):
    """Pure-JAX reference replicating torch.nn.GRU + nn.Linear."""
    H = h0.shape[-1]

    def step(h, x_t):
        gx = x_t @ w_ih.T + b_ih
        gh = h @ w_hh.T + b_hh
        r = jax.nn.sigmoid(gx[:, 0:H] + gh[:, 0:H])
        z = jax.nn.sigmoid(gx[:, H:2 * H] + gh[:, H:2 * H])
        n = jnp.tanh(gx[:, 2 * H:3 * H] + r * gh[:, 2 * H:3 * H])
        h_new = (1.0 - z) * n + z * h
        return h_new, h_new

    h_last, hs = lax.scan(step, h0[0], x)
    y = hs @ w_fc.T + b_fc
    return y, h_last[None]


if __name__ == "__main__":
    # Small shapes consistent with the module's forward.
    S, B, I, H, O = 8, 4, 16, 32, 8

    key = jax.random.PRNGKey(0)
    keys = jax.random.split(key, 8)
    bound = 1.0 / jnp.sqrt(jnp.float32(H))

    x = jax.random.normal(keys[0], (S, B, I), jnp.float32)
    h0 = jnp.zeros((1, B, H), jnp.float32)
    w_ih = jax.random.uniform(keys[1], (3 * H, I), jnp.float32, -bound, bound)
    w_hh = jax.random.uniform(keys[2], (3 * H, H), jnp.float32, -bound, bound)
    b_ih = jax.random.uniform(keys[3], (3 * H,), jnp.float32, -bound, bound)
    b_hh = jax.random.uniform(keys[4], (3 * H,), jnp.float32, -bound, bound)
    w_fc = jax.random.uniform(keys[5], (O, H), jnp.float32, -bound, bound)
    b_fc = jax.random.uniform(keys[6], (O,), jnp.float32, -bound, bound)

    # Weight packing/padding happens ONCE, outside the per-call path.
    params = prepare_params(w_ih, w_hh, b_ih, b_hh, w_fc, b_fc)

    y, hn = gru_fc_forward(x, h0, params, output_size=O)
    jax.block_until_ready((y, hn))

    y_ref, hn_ref = _reference_forward(x, h0, w_ih, w_hh, b_ih, b_hh,
                                       w_fc, b_fc)
    assert y.shape == (S, B, O) and hn.shape == (1, B, H)
    assert jnp.allclose(y, y_ref, atol=1e-5, rtol=1e-5)
    assert jnp.allclose(hn, hn_ref, atol=1e-5, rtol=1e-5)

    print("KERNEL_OK")
</pallas_src>

<mosaic_0001>
module attributes {stable_mosaic.version = 11 : i64} {
  func.func @_gru_fc_kernel(%arg0: i32, %arg1: memref<64x16xf32, #tpu.memory_space<vmem>>, %arg2: memref<8x32xf32, #tpu.memory_space<vmem>>, %arg3: memref<16x128xf32, #tpu.memory_space<vmem>>, %arg4: memref<32x128xf32, #tpu.memory_space<vmem>>, %arg5: memref<1x128xf32, #tpu.memory_space<vmem>>, %arg6: memref<1x128xf32, #tpu.memory_space<vmem>>, %arg7: memref<32x128xf32, #tpu.memory_space<vmem>>, %arg8: memref<1x128xf32, #tpu.memory_space<vmem>>, %arg9: memref<64x128xf32, #tpu.memory_space<vmem>>, %arg10: memref<8x32xf32, #tpu.memory_space<vmem>>, %arg11: memref<64x128xf32, #tpu.memory_space<vmem>>, %arg12: memref<64x32xf32, #tpu.memory_space<vmem>>) attributes {dimension_semantics = [#tpu.dimension_semantics<arbitrary>], iteration_bounds = array<i64: 1>, scalar_prefetch = 0 : i64, scratch_operands = 2 : i64, tpu.core_type = #tpu.core_type<tc>, window_params = [{pipeline_mode = #tpu.pipeline_mode<synchronous>, transform_indices = @transform_0, window_bounds = array<i64: 64, 16>}, {pipeline_mode = #tpu.pipeline_mode<synchronous>, transform_indices = @transform_1, window_bounds = array<i64: 8, 32>}, {pipeline_mode = #tpu.pipeline_mode<synchronous>, transform_indices = @transform_2, window_bounds = array<i64: 16, 128>}, {pipeline_mode = #tpu.pipeline_mode<synchronous>, transform_indices = @transform_3, window_bounds = array<i64: 32, 128>}, {pipeline_mode = #tpu.pipeline_mode<synchronous>, transform_indices = @transform_4, window_bounds = array<i64: 1, 128>}, {pipeline_mode = #tpu.pipeline_mode<synchronous>, transform_indices = @transform_5, window_bounds = array<i64: 1, 128>}, {pipeline_mode = #tpu.pipeline_mode<synchronous>, transform_indices = @transform_6, window_bounds = array<i64: 32, 128>}, {pipeline_mode = #tpu.pipeline_mode<synchronous>, transform_indices = @transform_7, window_bounds = array<i64: 1, 128>}, {pipeline_mode = #tpu.pipeline_mode<synchronous>, transform_indices = @transform_8, window_bounds = array<i64: 64, 128>}, {pipeline_mode = #tpu.pipeline_mode<synchronous>, transform_indices = @transform_9, window_bounds = array<i64: 8, 32>}]} {
    %c0 = arith.constant 0 : index
    %c0_0 = arith.constant 0 : index
    %0 = vector.load %arg1[%c0, %c0_0] : memref<64x16xf32, #tpu.memory_space<vmem>>, vector<64x16xf32>
    %c0_1 = arith.constant 0 : index
    %c0_2 = arith.constant 0 : index
    %1 = vector.load %arg3[%c0_1, %c0_2] : memref<16x128xf32, #tpu.memory_space<vmem>>, vector<16x128xf32>
    %cst = arith.constant dense<0.000000e+00> : vector<64x128xf32>
    %2 = tpu.matmul %0, %1, %cst {dimension_numbers = #tpu.dot_dimension_numbers<[1], [0], [0], [1], [0, 0, 1, 1], [], []>} : vector<64x16xf32>, vector<16x128xf32>, vector<64x128xf32> -> vector<64x128xf32>
    %c0_3 = arith.constant 0 : index
    %c0_4 = arith.constant 0 : index
    %3 = vector.load %arg5[%c0_3, %c0_4] : memref<1x128xf32, #tpu.memory_space<vmem>>, vector<1x128xf32>
    %4 = vector.broadcast %3 : vector<1x128xf32> to vector<64x128xf32>
    %5 = arith.addf %2, %4 : vector<64x128xf32>
    %c0_5 = arith.constant 0 : index
    %c0_6 = arith.constant 0 : index
    %6 = vector.load %arg11[%c0_5, %c0_6] : memref<64x128xf32, #tpu.memory_space<vmem>>, vector<64x128xf32>
    tpu.vector_store %arg11[%c0_5, %c0_6], %5 {strides = array<i32>} : memref<64x128xf32, #tpu.memory_space<vmem>>, vector<64x128xf32>,
    %c0_7 = arith.constant 0 : index
    %c0_8 = arith.constant 0 : index
    %7 = vector.load %arg4[%c0_7, %c0_8] : memref<32x128xf32, #tpu.memory_space<vmem>>, vector<32x128xf32>
    %c0_9 = arith.constant 0 : index
    %c0_10 = arith.constant 0 : index
    %8 = vector.load %arg6[%c0_9, %c0_10] : memref<1x128xf32, #tpu.memory_space<vmem>>, vector<1x128xf32>
    %9 = vector.shape_cast %8 : vector<1x128xf32> to vector<1x128xf32>
    %10 = vector.broadcast %9 : vector<1x128xf32> to vector<8x128xf32>
    %c0_11 = arith.constant 0 : index
    %c0_12 = arith.constant 0 : index
    %11 = vector.load %arg2[%c0_11, %c0_12] : memref<8x32xf32, #tpu.memory_space<vmem>>, vector<8x32xf32>
    %c0_i32 = arith.constant 0 : i32
    %c8_i32 = arith.constant 8 : i32
    %12 = arith.muli %c0_i32, %c8_i32 : i32
    %13 = tpu.assume_multiple %12, 8 : i32
    %14 = arith.index_cast %13 : i32 to index
    %c0_13 = arith.constant 0 : index
    %15 = vector.load %arg11[%14, %c0_13] : memref<64x128xf32, #tpu.memory_space<vmem>>, vector<8x128xf32>
    %cst_14 = arith.constant dense<0.000000e+00> : vector<8x128xf32>
    %16 = tpu.matmul %11, %7, %cst_14 {dimension_numbers = #tpu.dot_dimension_numbers<[1], [0], [0], [1], [0, 0, 1, 1], [], []>} : vector<8x32xf32>, vector<32x128xf32>, vector<8x128xf32> -> vector<8x128xf32>
    %17 = arith.addf %16, %10 : vector<8x128xf32>
    %18 = vector.extract_strided_slice %15 {offsets = [0, 0], sizes = [8, 64], strides = [1, 1]} : vector<8x128xf32> to vector<8x64xf32>
    %19 = vector.extract_strided_slice %17 {offsets = [0, 0], sizes = [8, 64], strides = [1, 1]} : vector<8x128xf32> to vector<8x64xf32>
    %20 = arith.addf %18, %19 : vector<8x64xf32>
    %21 = arith.negf %20 : vector<8x64xf32>
    %22 = math.exp %21 : vector<8x64xf32>
    %cst_15 = arith.constant 1.000000e+00 : f32
    %23 = vector.broadcast %cst_15 : f32 to vector<8x64xf32>
    %24 = arith.addf %23, %22 : vector<8x64xf32>
    %25 = arith.divf %23, %24 : vector<8x64xf32>
    %26 = vector.extract_strided_slice %25 {offsets = [0, 0], sizes = [8, 32], strides = [1, 1]} : vector<8x64xf32> to vector<8x32xf32>
    %27 = vector.extract_strided_slice %25 {offsets = [0, 32], sizes = [8, 32], strides = [1, 1]} : vector<8x64xf32> to vector<8x32xf32>
    %28 = vector.extract_strided_slice %15 {offsets = [0, 64], sizes = [8, 32], strides = [1, 1]} : vector<8x128xf32> to vector<8x32xf32>
    %29 = vector.extract_strided_slice %17 {offsets = [0, 64], sizes = [8, 32], strides = [1, 1]} : vector<8x128xf32> to vector<8x32xf32>
    %30 = arith.mulf %26, %29 : vector<8x32xf32>
    %31 = arith.addf %28, %30 : vector<8x32xf32>
    %32 = math.tanh %31 : vector<8x32xf32>
    %cst_16 = arith.constant 1.000000e+00 : f32
    %33 = vector.broadcast %cst_16 : f32 to vector<8x32xf32>
    %34 = arith.subf %33, %27 : vector<8x32xf32>
    %35 = arith.mulf %34, %32 : vector<8x32xf32>
    %36 = arith.mulf %27, %11 : vector<8x32xf32>
    %37 = arith.addf %35, %36 : vector<8x32xf32>
    %38 = arith.index_cast %13 : i32 to index
    %c0_17 = arith.constant 0 : index
    %39 = vector.load %arg12[%38, %c0_17] : memref<64x32xf32, #tpu.memory_space<vmem>>, vector<8x32xf32>
    tpu.vector_store %arg12[%38, %c0_17], %37 {strides = array<i32>} : memref<64x32xf32, #tpu.memory_space<vmem>>, vector<8x32xf32>,
    %c1_i32 = arith.constant 1 : i32
    %c8_i32_18 = arith.constant 8 : i32
    %40 = arith.muli %c1_i32, %c8_i32_18 : i32
    %41 = tpu.assume_multiple %40, 8 : i32
    %42 = arith.index_cast %41 : i32 to index
    %c0_19 = arith.constant 0 : index
    %43 = vector.load %arg11[%42, %c0_19] : memref<64x128xf32, #tpu.memory_space<vmem>>, vector<8x128xf32>
    %cst_20 = arith.constant dense<0.000000e+00> : vector<8x128xf32>
    %44 = tpu.matmul %37, %7, %cst_20 {dimension_numbers = #tpu.dot_dimension_numbers<[1], [0], [0], [1], [0, 0, 1, 1], [], []>} : vector<8x32xf32>, vector<32x128xf32>, vector<8x128xf32> -> vector<8x128xf32>
    %45 = arith.addf %44, %10 : vector<8x128xf32>
    %46 = vector.extract_strided_slice %43 {offsets = [0, 0], sizes = [8, 64], strides = [1, 1]} : vector<8x128xf32> to vector<8x64xf32>
    %47 = vector.extract_strided_slice %45 {offsets = [0, 0], sizes = [8, 64], strides = [1, 1]} : vector<8x128xf32> to vector<8x64xf32>
    %48 = arith.addf %46, %47 : vector<8x64xf32>
    %49 = arith.negf %48 : vector<8x64xf32>
    %50 = math.exp %49 : vector<8x64xf32>
    %cst_21 = arith.constant 1.000000e+00 : f32
    %51 = vector.broadcast %cst_21 : f32 to vector<8x64xf32>
    %52 = arith.addf %51, %50 : vector<8x64xf32>
    %53 = arith.divf %51, %52 : vector<8x64xf32>
    %54 = vector.extract_strided_slice %53 {offsets = [0, 0], sizes = [8, 32], strides = [1, 1]} : vector<8x64xf32> to vector<8x32xf32>
    %55 = vector.extract_strided_slice %53 {offsets = [0, 32], sizes = [8, 32], strides = [1, 1]} : vector<8x64xf32> to vector<8x32xf32>
    %56 = vector.extract_strided_slice %43 {offsets = [0, 64], sizes = [8, 32], strides = [1, 1]} : vector<8x128xf32> to vector<8x32xf32>
    %57 = vector.extract_strided_slice %45 {offsets = [0, 64], sizes = [8, 32], strides = [1, 1]} : vector<8x128xf32> to vector<8x32xf32>
    %58 = arith.mulf %54, %57 : vector<8x32xf32>
    %59 = arith.addf %56, %58 : vector<8x32xf32>
    %60 = math.tanh %59 : vector<8x32xf32>
    %cst_22 = arith.constant 1.000000e+00 : f32
    %61 = vector.broadcast %cst_22 : f32 to vector<8x32xf32>
    %62 = arith.subf %61, %55 : vector<8x32xf32>
    %63 = arith.mulf %62, %60 : vector<8x32xf32>
    %64 = arith.mulf %55, %37 : vector<8x32xf32>
    %65 = arith.addf %63, %64 : vector<8x32xf32>
    %66 = arith.index_cast %41 : i32 to index
    %c0_23 = arith.constant 0 : index
    %67 = vector.load %arg12[%66, %c0_23] : memref<64x32xf32, #tpu.memory_space<vmem>>, vector<8x32xf32>
    tpu.vector_store %arg12[%66, %c0_23], %65 {strides = array<i32>} : memref<64x32xf32, #tpu.memory_space<vmem>>, vector<8x32xf32>,
    %c2_i32 = arith.constant 2 : i32
    %c8_i32_24 = arith.constant 8 : i32
    %68 = arith.muli %c2_i32, %c8_i32_24 : i32
    %69 = tpu.assume_multiple %68, 8 : i32
    %70 = arith.index_cast %69 : i32 to index
    %c0_25 = arith.constant 0 : index
    %71 = vector.load %arg11[%70, %c0_25] : memref<64x128xf32, #tpu.memory_space<vmem>>, vector<8x128xf32>
    %cst_26 = arith.constant dense<0.000000e+00> : vector<8x128xf32>
    %72 = tpu.matmul %65, %7, %cst_26 {dimension_numbers = #tpu.dot_dimension_numbers<[1], [0], [0], [1], [0, 0, 1, 1], [], []>} : vector<8x32xf32>, vector<32x128xf32>, vector<8x128xf32> -> vector<8x128xf32>
    %73 = arith.addf %72, %10 : vector<8x128xf32>
    %74 = vector.extract_strided_slice %71 {offsets = [0, 0], sizes = [8, 64], strides = [1, 1]} : vector<8x128xf32> to vector<8x64xf32>
    %75 = vector.extract_strided_slice %73 {offsets = [0, 0], sizes = [8, 64], strides = [1, 1]} : vector<8x128xf32> to vector<8x64xf32>
    %76 = arith.addf %74, %75 : vector<8x64xf32>
    %77 = arith.negf %76 : vector<8x64xf32>
    %78 = math.exp %77 : vector<8x64xf32>
    %cst_27 = arith.constant 1.000000e+00 : f32
    %79 = vector.broadcast %cst_27 : f32 to vector<8x64xf32>
    %80 = arith.addf %79, %78 : vector<8x64xf32>
    %81 = arith.divf %79, %80 : vector<8x64xf32>
    %82 = vector.extract_strided_slice %81 {offsets = [0, 0], sizes = [8, 32], strides = [1, 1]} : vector<8x64xf32> to vector<8x32xf32>
    %83 = vector.extract_strided_slice %81 {offsets = [0, 32], sizes = [8, 32], strides = [1, 1]} : vector<8x64xf32> to vector<8x32xf32>
    %84 = vector.extract_strided_slice %71 {offsets = [0, 64], sizes = [8, 32], strides = [1, 1]} : vector<8x128xf32> to vector<8x32xf32>
    %85 = vector.extract_strided_slice %73 {offsets = [0, 64], sizes = [8, 32], strides = [1, 1]} : vector<8x128xf32> to vector<8x32xf32>
    %86 = arith.mulf %82, %85 : vector<8x32xf32>
    %87 = arith.addf %84, %86 : vector<8x32xf32>
    %88 = math.tanh %87 : vector<8x32xf32>
    %cst_28 = arith.constant 1.000000e+00 : f32
    %89 = vector.broadcast %cst_28 : f32 to vector<8x32xf32>
    %90 = arith.subf %89, %83 : vector<8x32xf32>
    %91 = arith.mulf %90, %88 : vector<8x32xf32>
    %92 = arith.mulf %83, %65 : vector<8x32xf32>
    %93 = arith.addf %91, %92 : vector<8x32xf32>
    %94 = arith.index_cast %69 : i32 to index
    %c0_29 = arith.constant 0 : index
    %95 = vector.load %arg12[%94, %c0_29] : memref<64x32xf32, #tpu.memory_space<vmem>>, vector<8x32xf32>
    tpu.vector_store %arg12[%94, %c0_29], %93 {strides = array<i32>} : memref<64x32xf32, #tpu.memory_space<vmem>>, vector<8x32xf32>,
    %c3_i32 = arith.constant 3 : i32
    %c8_i32_30 = arith.constant 8 : i32
    %96 = arith.muli %c3_i32, %c8_i32_30 : i32
    %97 = tpu.assume_multiple %96, 8 : i32
    %98 = arith.index_cast %97 : i32 to index
    %c0_31 = arith.constant 0 : index
    %99 = vector.load %arg11[%98, %c0_31] : memref<64x128xf32, #tpu.memory_space<vmem>>, vector<8x128xf32>
    %cst_32 = arith.constant dense<0.000000e+00> : vector<8x128xf32>
    %100 = tpu.matmul %93, %7, %cst_32 {dimension_numbers = #tpu.dot_dimension_numbers<[1], [0], [0], [1], [0, 0, 1, 1], [], []>} : vector<8x32xf32>, vector<32x128xf32>, vector<8x128xf32> -> vector<8x128xf32>
    %101 = arith.addf %100, %10 : vector<8x128xf32>
    %102 = vector.extract_strided_slice %99 {offsets = [0, 0], sizes = [8, 64], strides = [1, 1]} : vector<8x128xf32> to vector<8x64xf32>
    %103 = vector.extract_strided_slice %101 {offsets = [0, 0], sizes = [8, 64], strides = [1, 1]} : vector<8x128xf32> to vector<8x64xf32>
    %104 = arith.addf %102, %103 : vector<8x64xf32>
    %105 = arith.negf %104 : vector<8x64xf32>
    %106 = math.exp %105 : vector<8x64xf32>
    %cst_33 = arith.constant 1.000000e+00 : f32
    %107 = vector.broadcast %cst_33 : f32 to vector<8x64xf32>
    %108 = arith.addf %107, %106 : vector<8x64xf32>
    %109 = arith.divf %107, %108 : vector<8x64xf32>
    %110 = vector.extract_strided_slice %109 {offsets = [0, 0], sizes = [8, 32], strides = [1, 1]} : vector<8x64xf32> to vector<8x32xf32>
    %111 = vector.extract_strided_slice %109 {offsets = [0, 32], sizes = [8, 32], strides = [1, 1]} : vector<8x64xf32> to vector<8x32xf32>
    %112 = vector.extract_strided_slice %99 {offsets = [0, 64], sizes = [8, 32], strides = [1, 1]} : vector<8x128xf32> to vector<8x32xf32>
    %113 = vector.extract_strided_slice %101 {offsets = [0, 64], sizes = [8, 32], strides = [1, 1]} : vector<8x128xf32> to vector<8x32xf32>
    %114 = arith.mulf %110, %113 : vector<8x32xf32>
    %115 = arith.addf %112, %114 : vector<8x32xf32>
    %116 = math.tanh %115 : vector<8x32xf32>
    %cst_34 = arith.constant 1.000000e+00 : f32
    %117 = vector.broadcast %cst_34 : f32 to vector<8x32xf32>
    %118 = arith.subf %117, %111 : vector<8x32xf32>
    %119 = arith.mulf %118, %116 : vector<8x32xf32>
    %120 = arith.mulf %111, %93 : vector<8x32xf32>
    %121 = arith.addf %119, %120 : vector<8x32xf32>
    %122 = arith.index_cast %97 : i32 to index
    %c0_35 = arith.constant 0 : index
    %123 = vector.load %arg12[%122, %c0_35] : memref<64x32xf32, #tpu.memory_space<vmem>>, vector<8x32xf32>
    tpu.vector_store %arg12[%122, %c0_35], %121 {strides = array<i32>} : memref<64x32xf32, #tpu.memory_space<vmem>>, vector<8x32xf32>,
    %c4_i32 = arith.constant 4 : i32
    %c8_i32_36 = arith.constant 8 : i32
    %124 = arith.muli %c4_i32, %c8_i32_36 : i32
    %125 = tpu.assume_multiple %124, 8 : i32
    %126 = arith.index_cast %125 : i32 to index
    %c0_37 = arith.constant 0 : index
    %127 = vector.load %arg11[%126, %c0_37] : memref<64x128xf32, #tpu.memory_space<vmem>>, vector<8x128xf32>
    %cst_38 = arith.constant dense<0.000000e+00> : vector<8x128xf32>
    %128 = tpu.matmul %121, %7, %cst_38 {dimension_numbers = #tpu.dot_dimension_numbers<[1], [0], [0], [1], [0, 0, 1, 1], [], []>} : vector<8x32xf32>, vector<32x128xf32>, vector<8x128xf32> -> vector<8x128xf32>
    %129 = arith.addf %128, %10 : vector<8x128xf32>
    %130 = vector.extract_strided_slice %127 {offsets = [0, 0], sizes = [8, 64], strides = [1, 1]} : vector<8x128xf32> to vector<8x64xf32>
    %131 = vector.extract_strided_slice %129 {offsets = [0, 0], sizes = [8, 64], strides = [1, 1]} : vector<8x128xf32> to vector<8x64xf32>
    %132 = arith.addf %130, %131 : vector<8x64xf32>
    %133 = arith.negf %132 : vector<8x64xf32>
    %134 = math.exp %133 : vector<8x64xf32>
    %cst_39 = arith.constant 1.000000e+00 : f32
    %135 = vector.broadcast %cst_39 : f32 to vector<8x64xf32>
    %136 = arith.addf %135, %134 : vector<8x64xf32>
    %137 = arith.divf %135, %136 : vector<8x64xf32>
    %138 = vector.extract_strided_slice %137 {offsets = [0, 0], sizes = [8, 32], strides = [1, 1]} : vector<8x64xf32> to vector<8x32xf32>
    %139 = vector.extract_strided_slice %137 {offsets = [0, 32], sizes = [8, 32], strides = [1, 1]} : vector<8x64xf32> to vector<8x32xf32>
    %140 = vector.extract_strided_slice %127 {offsets = [0, 64], sizes = [8, 32], strides = [1, 1]} : vector<8x128xf32> to vector<8x32xf32>
    %141 = vector.extract_strided_slice %129 {offsets = [0, 64], sizes = [8, 32], strides = [1, 1]} : vector<8x128xf32> to vector<8x32xf32>
    %142 = arith.mulf %138, %141 : vector<8x32xf32>
    %143 = arith.addf %140, %142 : vector<8x32xf32>
    %144 = math.tanh %143 : vector<8x32xf32>
    %cst_40 = arith.constant 1.000000e+00 : f32
    %145 = vector.broadcast %cst_40 : f32 to vector<8x32xf32>
    %146 = arith.subf %145, %139 : vector<8x32xf32>
    %147 = arith.mulf %146, %144 : vector<8x32xf32>
    %148 = arith.mulf %139, %121 : vector<8x32xf32>
    %149 = arith.addf %147, %148 : vector<8x32xf32>
    %150 = arith.index_cast %125 : i32 to index
    %c0_41 = arith.constant 0 : index
    %151 = vector.load %arg12[%150, %c0_41] : memref<64x32xf32, #tpu.memory_space<vmem>>, vector<8x32xf32>
    tpu.vector_store %arg12[%150, %c0_41], %149 {strides = array<i32>} : memref<64x32xf32, #tpu.memory_space<vmem>>, vector<8x32xf32>,
    %c5_i32 = arith.constant 5 : i32
    %c8_i32_42 = arith.constant 8 : i32
    %152 = arith.muli %c5_i32, %c8_i32_42 : i32
    %153 = tpu.assume_multiple %152, 8 : i32
    %154 = arith.index_cast %153 : i32 to index
    %c0_43 = arith.constant 0 : index
    %155 = vector.load %arg11[%154, %c0_43] : memref<64x128xf32, #tpu.memory_space<vmem>>, vector<8x128xf32>
    %cst_44 = arith.constant dense<0.000000e+00> : vector<8x128xf32>
    %156 = tpu.matmul %149, %7, %cst_44 {dimension_numbers = #tpu.dot_dimension_numbers<[1], [0], [0], [1], [0, 0, 1, 1], [], []>} : vector<8x32xf32>, vector<32x128xf32>, vector<8x128xf32> -> vector<8x128xf32>
    %157 = arith.addf %156, %10 : vector<8x128xf32>
    %158 = vector.extract_strided_slice %155 {offsets = [0, 0], sizes = [8, 64], strides = [1, 1]} : vector<8x128xf32> to vector<8x64xf32>
    %159 = vector.extract_strided_slice %157 {offsets = [0, 0], sizes = [8, 64], strides = [1, 1]} : vector<8x128xf32> to vector<8x64xf32>
    %160 = arith.addf %158, %159 : vector<8x64xf32>
    %161 = arith.negf %160 : vector<8x64xf32>
    %162 = math.exp %161 : vector<8x64xf32>
    %cst_45 = arith.constant 1.000000e+00 : f32
    %163 = vector.broadcast %cst_45 : f32 to vector<8x64xf32>
    %164 = arith.addf %163, %162 : vector<8x64xf32>
    %165 = arith.divf %163, %164 : vector<8x64xf32>
    %166 = vector.extract_strided_slice %165 {offsets = [0, 0], sizes = [8, 32], strides = [1, 1]} : vector<8x64xf32> to vector<8x32xf32>
    %167 = vector.extract_strided_slice %165 {offsets = [0, 32], sizes = [8, 32], strides = [1, 1]} : vector<8x64xf32> to vector<8x32xf32>
    %168 = vector.extract_strided_slice %155 {offsets = [0, 64], sizes = [8, 32], strides = [1, 1]} : vector<8x128xf32> to vector<8x32xf32>
    %169 = vector.extract_strided_slice %157 {offsets = [0, 64], sizes = [8, 32], strides = [1, 1]} : vector<8x128xf32> to vector<8x32xf32>
    %170 = arith.mulf %166, %169 : vector<8x32xf32>
    %171 = arith.addf %168, %170 : vector<8x32xf32>
    %172 = math.tanh %171 : vector<8x32xf32>
    %cst_46 = arith.constant 1.000000e+00 : f32
    %173 = vector.broadcast %cst_46 : f32 to vector<8x32xf32>
    %174 = arith.subf %173, %167 : vector<8x32xf32>
    %175 = arith.mulf %174, %172 : vector<8x32xf32>
    %176 = arith.mulf %167, %149 : vector<8x32xf32>
    %177 = arith.addf %175, %176 : vector<8x32xf32>
    %178 = arith.index_cast %153 : i32 to index
    %c0_47 = arith.constant 0 : index
    %179 = vector.load %arg12[%178, %c0_47] : memref<64x32xf32, #tpu.memory_space<vmem>>, vector<8x32xf32>
    tpu.vector_store %arg12[%178, %c0_47], %177 {strides = array<i32>} : memref<64x32xf32, #tpu.memory_space<vmem>>, vector<8x32xf32>,
    %c6_i32 = arith.constant 6 : i32
    %c8_i32_48 = arith.constant 8 : i32
    %180 = arith.muli %c6_i32, %c8_i32_48 : i32
    %181 = tpu.assume_multiple %180, 8 : i32
    %182 = arith.index_cast %181 : i32 to index
    %c0_49 = arith.constant 0 : index
    %183 = vector.load %arg11[%182, %c0_49] : memref<64x128xf32, #tpu.memory_space<vmem>>, vector<8x128xf32>
    %cst_50 = arith.constant dense<0.000000e+00> : vector<8x128xf32>
    %184 = tpu.matmul %177, %7, %cst_50 {dimension_numbers = #tpu.dot_dimension_numbers<[1], [0], [0], [1], [0, 0, 1, 1], [], []>} : vector<8x32xf32>, vector<32x128xf32>, vector<8x128xf32> -> vector<8x128xf32>
    %185 = arith.addf %184, %10 : vector<8x128xf32>
    %186 = vector.extract_strided_slice %183 {offsets = [0, 0], sizes = [8, 64], strides = [1, 1]} : vector<8x128xf32> to vector<8x64xf32>
    %187 = vector.extract_strided_slice %185 {offsets = [0, 0], sizes = [8, 64], strides = [1, 1]} : vector<8x128xf32> to vector<8x64xf32>
    %188 = arith.addf %186, %187 : vector<8x64xf32>
    %189 = arith.negf %188 : vector<8x64xf32>
    %190 = math.exp %189 : vector<8x64xf32>
    %cst_51 = arith.constant 1.000000e+00 : f32
    %191 = vector.broadcast %cst_51 : f32 to vector<8x64xf32>
    %192 = arith.addf %191, %190 : vector<8x64xf32>
    %193 = arith.divf %191, %192 : vector<8x64xf32>
    %194 = vector.extract_strided_slice %193 {offsets = [0, 0], sizes = [8, 32], strides = [1, 1]} : vector<8x64xf32> to vector<8x32xf32>
    %195 = vector.extract_strided_slice %193 {offsets = [0, 32], sizes = [8, 32], strides = [1, 1]} : vector<8x64xf32> to vector<8x32xf32>
    %196 = vector.extract_strided_slice %183 {offsets = [0, 64], sizes = [8, 32], strides = [1, 1]} : vector<8x128xf32> to vector<8x32xf32>
    %197 = vector.extract_strided_slice %185 {offsets = [0, 64], sizes = [8, 32], strides = [1, 1]} : vector<8x128xf32> to vector<8x32xf32>
    %198 = arith.mulf %194, %197 : vector<8x32xf32>
    %199 = arith.addf %196, %198 : vector<8x32xf32>
    %200 = math.tanh %199 : vector<8x32xf32>
    %cst_52 = arith.constant 1.000000e+00 : f32
    %201 = vector.broadcast %cst_52 : f32 to vector<8x32xf32>
    %202 = arith.subf %201, %195 : vector<8x32xf32>
    %203 = arith.mulf %202, %200 : vector<8x32xf32>
    %204 = arith.mulf %195, %177 : vector<8x32xf32>
    %205 = arith.addf %203, %204 : vector<8x32xf32>
    %206 = arith.index_cast %181 : i32 to index
    %c0_53 = arith.constant 0 : index
    %207 = vector.load %arg12[%206, %c0_53] : memref<64x32xf32, #tpu.memory_space<vmem>>, vector<8x32xf32>
    tpu.vector_store %arg12[%206, %c0_53], %205 {strides = array<i32>} : memref<64x32xf32, #tpu.memory_space<vmem>>, vector<8x32xf32>,
    %c7_i32 = arith.constant 7 : i32
    %c8_i32_54 = arith.constant 8 : i32
    %208 = arith.muli %c7_i32, %c8_i32_54 : i32
    %209 = tpu.assume_multiple %208, 8 : i32
    %210 = arith.index_cast %209 : i32 to index
    %c0_55 = arith.constant 0 : index
    %211 = vector.load %arg11[%210, %c0_55] : memref<64x128xf32, #tpu.memory_space<vmem>>, vector<8x128xf32>
    %cst_56 = arith.constant dense<0.000000e+00> : vector<8x128xf32>
    %212 = tpu.matmul %205, %7, %cst_56 {dimension_numbers = #tpu.dot_dimension_numbers<[1], [0], [0], [1], [0, 0, 1, 1], [], []>} : vector<8x32xf32>, vector<32x128xf32>, vector<8x128xf32> -> vector<8x128xf32>
    %213 = arith.addf %212, %10 : vector<8x128xf32>
    %214 = vector.extract_strided_slice %211 {offsets = [0, 0], sizes = [8, 64], strides = [1, 1]} : vector<8x128xf32> to vector<8x64xf32>
    %215 = vector.extract_strided_slice %213 {offsets = [0, 0], sizes = [8, 64], strides = [1, 1]} : vector<8x128xf32> to vector<8x64xf32>
    %216 = arith.addf %214, %215 : vector<8x64xf32>
    %217 = arith.negf %216 : vector<8x64xf32>
    %218 = math.exp %217 : vector<8x64xf32>
    %cst_57 = arith.constant 1.000000e+00 : f32
    %219 = vector.broadcast %cst_57 : f32 to vector<8x64xf32>
    %220 = arith.addf %219, %218 : vector<8x64xf32>
    %221 = arith.divf %219, %220 : vector<8x64xf32>
    %222 = vector.extract_strided_slice %221 {offsets = [0, 0], sizes = [8, 32], strides = [1, 1]} : vector<8x64xf32> to vector<8x32xf32>
    %223 = vector.extract_strided_slice %221 {offsets = [0, 32], sizes = [8, 32], strides = [1, 1]} : vector<8x64xf32> to vector<8x32xf32>
    %224 = vector.extract_strided_slice %211 {offsets = [0, 64], sizes = [8, 32], strides = [1, 1]} : vector<8x128xf32> to vector<8x32xf32>
    %225 = vector.extract_strided_slice %213 {offsets = [0, 64], sizes = [8, 32], strides = [1, 1]} : vector<8x128xf32> to vector<8x32xf32>
    %226 = arith.mulf %222, %225 : vector<8x32xf32>
    %227 = arith.addf %224, %226 : vector<8x32xf32>
    %228 = math.tanh %227 : vector<8x32xf32>
    %cst_58 = arith.constant 1.000000e+00 : f32
    %229 = vector.broadcast %cst_58 : f32 to vector<8x32xf32>
    %230 = arith.subf %229, %223 : vector<8x32xf32>
    %231 = arith.mulf %230, %228 : vector<8x32xf32>
    %232 = arith.mulf %223, %205 : vector<8x32xf32>
    %233 = arith.addf %231, %232 : vector<8x32xf32>
    %234 = arith.index_cast %209 : i32 to index
    %c0_59 = arith.constant 0 : index
    %235 = vector.load %arg12[%234, %c0_59] : memref<64x32xf32, #tpu.memory_space<vmem>>, vector<8x32xf32>
    tpu.vector_store %arg12[%234, %c0_59], %233 {strides = array<i32>} : memref<64x32xf32, #tpu.memory_space<vmem>>, vector<8x32xf32>,
    %c8_i32_60 = arith.constant 8 : i32
    %c0_61 = arith.constant 0 : index
    %c0_62 = arith.constant 0 : index
    %236 = vector.load %arg10[%c0_61, %c0_62] : memref<8x32xf32, #tpu.memory_space<vmem>>, vector<8x32xf32>
    tpu.vector_store %arg10[%c0_61, %c0_62], %233 {strides = array<i32>} : memref<8x32xf32, #tpu.memory_space<vmem>>, vector<8x32xf32>,
    %c0_63 = arith.constant 0 : index
    %c0_64 = arith.constant 0 : index
    %237 = vector.load %arg12[%c0_63, %c0_64] : memref<64x32xf32, #tpu.memory_space<vmem>>, vector<64x32xf32>
    %c0_65 = arith.constant 0 : index
    %c0_66 = arith.constant 0 : index
    %238 = vector.load %arg7[%c0_65, %c0_66] : memref<32x128xf32, #tpu.memory_space<vmem>>, vector<32x128xf32>
    %cst_67 = arith.constant dense<0.000000e+00> : vector<64x128xf32>
    %239 = tpu.matmul %237, %238, %cst_67 {dimension_numbers = #tpu.dot_dimension_numbers<[1], [0], [0], [1], [0, 0, 1, 1], [], []>} : vector<64x32xf32>, vector<32x128xf32>, vector<64x128xf32> -> vector<64x128xf32>
    %c0_68 = arith.constant 0 : index
    %c0_69 = arith.constant 0 : index
    %240 = vector.load %arg8[%c0_68, %c0_69] : memref<1x128xf32, #tpu.memory_space<vmem>>, vector<1x128xf32>
    %241 = vector.broadcast %240 : vector<1x128xf32> to vector<64x128xf32>
    %242 = arith.addf %239, %241 : vector<64x128xf32>
    %c0_70 = arith.constant 0 : index
    %c0_71 = arith.constant 0 : index
    %243 = vector.load %arg9[%c0_70, %c0_71] : memref<64x128xf32, #tpu.memory_space<vmem>>, vector<64x128xf32>
    tpu.vector_store %arg9[%c0_70, %c0_71], %242 {strides = array<i32>} : memref<64x128xf32, #tpu.memory_space<vmem>>, vector<64x128xf32>,
    return
  }
  func.func @transform_0(%arg0: i32) -> (i32, i32) {
    %c0_i32 = arith.constant 0 : i32
    %c0_i32_0 = arith.constant 0 : i32
    %c0_i32_1 = arith.constant 0 : i32
    return %c0_i32, %c0_i32_0 : i32, i32
  }
  func.func @transform_1(%arg0: i32) -> (i32, i32) {
    %c0_i32 = arith.constant 0 : i32
    %c0_i32_0 = arith.constant 0 : i32
    %c0_i32_1 = arith.constant 0 : i32
    return %c0_i32, %c0_i32_0 : i32, i32
  }
  func.func @transform_2(%arg0: i32) -> (i32, i32) {
    %c0_i32 = arith.constant 0 : i32
    %c0_i32_0 = arith.constant 0 : i32
    %c0_i32_1 = arith.constant 0 : i32
    return %c0_i32, %c0_i32_0 : i32, i32
  }
  func.func @transform_3(%arg0: i32) -> (i32, i32) {
    %c0_i32 = arith.constant 0 : i32
    %c0_i32_0 = arith.constant 0 : i32
    %c0_i32_1 = arith.constant 0 : i32
    return %c0_i32, %c0_i32_0 : i32, i32
  }
  func.func @transform_4(%arg0: i32) -> (i32, i32) {
    %c0_i32 = arith.constant 0 : i32
    %c0_i32_0 = arith.constant 0 : i32
    %c0_i32_1 = arith.constant 0 : i32
    return %c0_i32, %c0_i32_0 : i32, i32
  }
  func.func @transform_5(%arg0: i32) -> (i32, i32) {
    %c0_i32 = arith.constant 0 : i32
    %c0_i32_0 = arith.constant 0 : i32
    %c0_i32_1 = arith.constant 0 : i32
    return %c0_i32, %c0_i32_0 : i32, i32
  }
  func.func @transform_6(%arg0: i32) -> (i32, i32) {
    %c0_i32 = arith.constant 0 : i32
    %c0_i32_0 = arith.constant 0 : i32
    %c0_i32_1 = arith.constant 0 : i32
    return %c0_i32, %c0_i32_0 : i32, i32
  }
  func.func @transform_7(%arg0: i32) -> (i32, i32) {
    %c0_i32 = arith.constant 0 : i32
    %c0_i32_0 = arith.constant 0 : i32
    %c0_i32_1 = arith.constant 0 : i32
    return %c0_i32, %c0_i32_0 : i32, i32
  }
  func.func @transform_8(%arg0: i32) -> (i32, i32) {
    %c0_i32 = arith.constant 0 : i32
    %c0_i32_0 = arith.constant 0 : i32
    %c0_i32_1 = arith.constant 0 : i32
    return %c0_i32, %c0_i32_0 : i32, i32
  }
  func.func @transform_9(%arg0: i32) -> (i32, i32) {
    %c0_i32 = arith.constant 0 : i32
    %c0_i32_0 = arith.constant 0 : i32
    %c0_i32_1 = arith.constant 0 : i32
    return %c0_i32, %c0_i32_0 : i32, i32
  }
}

</mosaic_0001>

<llo_original>
// kernel: gru_fc_forward.1
$region0: #{gru_fc_forward.1}
  #allocation0 [shape = 'u32[]', space=smem, size = 0x4, offset = 0x4, fixed_abs, tag = 'smem constant byte address 0x4 - core index']
  #allocation1 [shape = 'u32[72,128]{1,0:T(1,128)}', space=vmem, size = 0x9000, scoped, tag = 'internal scratch']
  #allocation2 [shape = 'f32[64,128]{1,0:T(8,128)}', space=vmem, size = 0x8000, scoped, tag = 'scratch operand']
  #allocation3 [shape = 'f32[64,32]{1,0:T(8,128)}', space=vmem, size = 0x8000, scoped, tag = 'scratch operand']
  %s0 = inlined_call_operand.vmem [shape: f32[64,16], index: 0, kind: input, shape index: {}]
  %s1 = inlined_call_operand.vmem [shape: f32[8,32], index: 1, kind: input, shape index: {}]
  %s2 = inlined_call_operand.vmem [shape: f32[16,128], index: 2, kind: input, shape index: {}]
  %s3 = inlined_call_operand.vmem [shape: f32[32,128], index: 3, kind: input, shape index: {}]
  %s4 = inlined_call_operand.vmem [shape: f32[1,128], index: 4, kind: input, shape index: {}]
  %s5 = inlined_call_operand.vmem [shape: f32[1,128], index: 5, kind: input, shape index: {}]
  %s6 = inlined_call_operand.vmem [shape: f32[32,128], index: 6, kind: input, shape index: {}]
  %s7 = inlined_call_operand.vmem [shape: f32[1,128], index: 7, kind: input, shape index: {}]
  %s8 = inlined_call_operand.vmem [shape: f32[64,128], index: 8, kind: output, shape index: {0}]
  %s9 = inlined_call_operand.vmem [shape: f32[8,32], index: 9, kind: output, shape index: {1}]
  %10 = xla_tuple %s8, %s9
  %s11 = sld [smem:[#allocation0]]
  $region50: #{gru_fc_forward.1} parent=0
    _
  %s13 = ssub.s32 1, %s11
  %s14 = scalar_select 0, %s13, %s11
  // Predicated region
  $region2: #{gru_fc_forward.1} parent=0 // pred_check
    _
  $region3: #{gru_fc_forward.1} parent=0 // pred_check_branch
    %16 = sbr.rel (0) target = $region5
  $region4: #{gru_fc_forward.1} parent=0 // pred_region
    _
  $region5: #{gru_fc_forward.1} parent=0 // pred_fallthru
    _
  // Predicated region
  $region6: #{gru_fc_forward.1} parent=0 // pred_check
    _
  $region7: #{gru_fc_forward.1} parent=0 // pred_check_branch
    %18 = sbr.rel (0) target = $region9
  $region8: #{gru_fc_forward.1} parent=0 // pred_region
    _
  $region9: #{gru_fc_forward.1} parent=0 // pred_fallthru
    _
  // Predicated region
  $region10: #{gru_fc_forward.1} parent=0 // pred_check
    _
  $region11: #{gru_fc_forward.1} parent=0 // pred_check_branch
    %20 = sbr.rel (0) target = $region13
  $region12: #{gru_fc_forward.1} parent=0 // pred_region
    _
  $region13: #{gru_fc_forward.1} parent=0 // pred_fallthru
    _
  // Predicated region
  $region14: #{gru_fc_forward.1} parent=0 // pred_check
    _
  $region15: #{gru_fc_forward.1} parent=0 // pred_check_branch
    %22 = sbr.rel (0) target = $region17
  $region16: #{gru_fc_forward.1} parent=0 // pred_region
    _
  $region17: #{gru_fc_forward.1} parent=0 // pred_fallthru
    _
  // Predicated region
  $region18: #{gru_fc_forward.1} parent=0 // pred_check
    _
  $region19: #{gru_fc_forward.1} parent=0 // pred_check_branch
    %24 = sbr.rel (0) target = $region21
  $region20: #{gru_fc_forward.1} parent=0 // pred_region
    _
  $region21: #{gru_fc_forward.1} parent=0 // pred_fallthru
    _
  // Predicated region
  $region22: #{gru_fc_forward.1} parent=0 // pred_check
    _
  $region23: #{gru_fc_forward.1} parent=0 // pred_check_branch
    %26 = sbr.rel (0) target = $region25
  $region24: #{gru_fc_forward.1} parent=0 // pred_region
    _
  $region25: #{gru_fc_forward.1} parent=0 // pred_fallthru
    _
  // Predicated region
  $region26: #{gru_fc_forward.1} parent=0 // pred_check
    _
  $region27: #{gru_fc_forward.1} parent=0 // pred_check_branch
    %28 = sbr.rel (0) target = $region29
  $region28: #{gru_fc_forward.1} parent=0 // pred_region
    _
  $region29: #{gru_fc_forward.1} parent=0 // pred_fallthru
    _
  // Predicated region
  $region30: #{gru_fc_forward.1} parent=0 // pred_check
    _
  $region31: #{gru_fc_forward.1} parent=0 // pred_check_branch
    %30 = sbr.rel (0) target = $region33
  $region32: #{gru_fc_forward.1} parent=0 // pred_region
    _
  $region33: #{gru_fc_forward.1} parent=0 // pred_fallthru
    _
  %v31 = vld [vmem:[%s0] sm:$0xff]
  %v32 = vld [vmem:[%s0 + $0x8] sm:$0xff]
  %v33 = vld [vmem:[%s0 + $0x10] sm:$0xff]
  %v34 = vld [vmem:[%s0 + $0x18] sm:$0xff]
  %v35 = vld [vmem:[%s0 + $0x20] sm:$0xff]
  %v36 = vld [vmem:[%s0 + $0x28] sm:$0xff]
  %v37 = vld [vmem:[%s0 + $0x30] sm:$0xff]
  %v38 = vld [vmem:[%s0 + $0x38] sm:$0xff]
  %v39 = vld [vmem:[%s2] sm:$0xff]
  %v40 = vld [vmem:[%s2 + $0x8] sm:$0xff]
  %v41 = vld [vmem:[%s4] sm:$0x1]
  %v43 = vperm.slane %v41, 0
  %vm45 = vcmask 130048
  %v47 = vsel %vm45, %v31, 0
  %v50 = vsel %vm45, %v32, 0
  %v53 = vsel %vm45, %v33, 0
  %v56 = vsel %vm45, %v34, 0
  %v59 = vsel %vm45, %v35, 0
  %v62 = vsel %vm45, %v36, 0
  %v65 = vsel %vm45, %v37, 0
  %v68 = vsel %vm45, %v38, 0
  %70 = vmatpush.msra.mxu0 0.0
  %71 = vmatpush.msra.mxu0 0.0
  %72 = vmatpush.msra.mxu0 0.0
  %73 = vmatpush.msra.mxu0 0.0
  %74 = vmatpush.msra.mxu0 0.0
  %75 = vmatpush.msra.mxu0 0.0
  %76 = vmatpush.msra.mxu0 0.0
  %77 = vmatpush.msra.mxu0 0.0
  %78 = vmatpush.msra.mxu0 0.0
  %79 = vmatpush.msra.mxu0 0.0
  %80 = vmatpush.msra.mxu0 0.0
  %81 = vmatpush.msra.mxu0 0.0
  %82 = vmatpush.msra.mxu0 0.0
  %83 = vmatpush.msra.mxu0 0.0
  %84 = vmatpush.msra.mxu0 %v40
  %85 = vmatpush.msra.mxu0 %v39
  %86 = vmatmul.f32.gmra.mxu0 %v47
  %v87 = vpop.f32.mrf.mxu0
  %v88 = vadd.f32 %v43, %v87
  %89 = vmatmul.f32.gmra.mxu0 %v50
  %v90 = vpop.f32.mrf.mxu0
  %v91 = vadd.f32 %v43, %v90
  %92 = vmatmul.f32.gmra.mxu0 %v53
  %v93 = vpop.f32.mrf.mxu0
  %v94 = vadd.f32 %v43, %v93
  %95 = vmatmul.f32.gmra.mxu0 %v56
  %v96 = vpop.f32.mrf.mxu0
  %v97 = vadd.f32 %v43, %v96
  %98 = vmatmul.f32.gmra.mxu0 %v59
  %v99 = vpop.f32.mrf.mxu0
  %v100 = vadd.f32 %v43, %v99
  %101 = vmatmul.f32.gmra.mxu0 %v62
  %v102 = vpop.f32.mrf.mxu0
  %v103 = vadd.f32 %v43, %v102
  %104 = vmatmul.f32.gmra.mxu0 %v65
  %v105 = vpop.f32.mrf.mxu0
  %v106 = vadd.f32 %v43, %v105
  %107 = vmatmul.f32.gmra.mxu0 %v68
  %v108 = vpop.f32.mrf.mxu0
  %v109 = vadd.f32 %v43, %v108
  %110 = vdwg.mxu0
  %111 = vst [vmem:[#allocation2] sm:$0xff] %v88
  %112 = vst [vmem:[#allocation2 + $0x8] sm:$0xff] %v91
  %113 = vst [vmem:[#allocation2 + $0x10] sm:$0xff] %v94
  %114 = vst [vmem:[#allocation2 + $0x18] sm:$0xff] %v97
  %115 = vst [vmem:[#allocation2 + $0x20] sm:$0xff] %v100
  %116 = vst [vmem:[#allocation2 + $0x28] sm:$0xff] %v103
  %117 = vst [vmem:[#allocation2 + $0x30] sm:$0xff] %v106
  %118 = vst [vmem:[#allocation2 + $0x38] sm:$0xff] %v109
  %v119 = vld [vmem:[%s3] sm:$0xff]
  %v120 = vld [vmem:[%s3 + $0x8] sm:$0xff]
  %v121 = vld [vmem:[%s3 + $0x10] sm:$0xff]
  %v122 = vld [vmem:[%s3 + $0x18] sm:$0xff]
  %v123 = vld [vmem:[%s5] sm:$0x1]
  %v125 = vperm.slane %v123, 0
  %v127 = vld [vmem:[%s1] sm:$0xff]
  %v128 = vld [vmem:[#allocation2] sm:$0xff]
  %vm129 = vcmask 261120
  %v131 = vsel %vm129, %v127, 0
  %133 = vmatpush.msra.mxu0 0.0
  %134 = vmatpush.msra.mxu0 0.0
  %135 = vmatpush.msra.mxu0 0.0
  %136 = vmatpush.msra.mxu0 0.0
  %137 = vmatpush.msra.mxu0 0.0
  %138 = vmatpush.msra.mxu0 0.0
  %139 = vmatpush.msra.mxu0 0.0
  %140 = vmatpush.msra.mxu0 0.0
  %141 = vmatpush.msra.mxu0 0.0
  %142 = vmatpush.msra.mxu0 0.0
  %143 = vmatpush.msra.mxu0 0.0
  %144 = vmatpush.msra.mxu0 0.0
  %145 = vmatpush.msra.mxu0 %v122
  %146 = vmatpush.msra.mxu0 %v121
  %147 = vmatpush.msra.mxu0 %v120
  %148 = vmatpush.msra.mxu0 %v119
  %149 = vmatmul.f32.gmra.mxu0 %v131
  %v150 = vpop.f32.mrf.mxu0
  %v151 = vadd.f32 %v125, %v150
  %152 = vdwg.mxu0
  %v153 = vadd.f32 %v128, %v151
  %v154 = vxor.u32 %v153, 2147483648
  %v155 = vmul.f32 %v154, 1.442695
  %v156 = vpow.pop %v155
  %v157 = vadd.f32 %v156, 1.0
  %v158 = vrcp.pop %v157
  %v159 = vmul.f32 %v157, %v158
  %v160 = vsub.f32 1.0, %v159
  %v161 = vmul.f32 %v158, %v160
  %v162 = vadd.f32 %v158, %v161
  %vm163 = vweird.f32 %v157
  %vm164 = vweird.f32 %v158
  %vm165 = vmor %vm163, %vm164
  %v166 = vsel %vm165, %v158, %v162
  %v167 = vand.u32 2147483647, %v157
  %vm168 = vcmp.eq.f32.partialorder %v167, 8.507059e+37
  %v169 = vand.u32 %v157, 2147483648
  %v170 = vor.u32 1.1754944e-38, %v169
  %v171 = vsel %vm168, %v170, %v166
  %v172 = vmul.f32 1.0, %v171
  %174 = vrot.lane.b32.xlu0 %v151, 64
  %v175 = vpop.permute.xlu0 %174
  %v177 = vmul.f32 %v172, %v175
  %179 = vrot.lane.b32.xlu0 %v177, 64
  %v180 = vpop.permute.xlu0 %179
  %v182 = vadd.f32 %v128, %v180
  %v183 = vtanh.pop %v182
  %v184 = vsub.f32 1.0, %v172
  %186 = vrot.lane.b32.xlu0 %v183, 96
  %v187 = vpop.permute.xlu0 %186
  %v189 = vmul.f32 %v184, %v187
  %190 = vrot.lane.b32.xlu0 %v127, 32
  %v191 = vpop.permute.xlu0 %190
  %v193 = vmul.f32 %v172, %v191
  %v194 = vadd.f32 %v189, %v193
  %196 = vrot.lane.b32.xlu0 %v194, 96
  %v197 = vpop.permute.xlu0 %196
  %199 = vst.msk [vmem:[#allocation3] sm:$0xff] %vm129, %v197
  %s200 = scalar_lea.vmem [#allocation2], 8
  %v201 = vld [vmem:[%s200] sm:$0xff]
  %v202 = vsel %vm129, %v197, 0
  %204 = vmatpush.msra.mxu0 0.0
  %205 = vmatpush.msra.mxu0 0.0
  %206 = vmatpush.msra.mxu0 0.0
  %207 = vmatpush.msra.mxu0 0.0
  %208 = vmatpush.msra.mxu0 0.0
  %209 = vmatpush.msra.mxu0 0.0
  %210 = vmatpush.msra.mxu0 0.0
  %211 = vmatpush.msra.mxu0 0.0
  %212 = vmatpush.msra.mxu0 0.0
  %213 = vmatpush.msra.mxu0 0.0
  %214 = vmatpush.msra.mxu0 0.0
  %215 = vmatpush.msra.mxu0 0.0
  %216 = vmatpush.msra.mxu0 %v122
  %217 = vmatpush.msra.mxu0 %v121
  %218 = vmatpush.msra.mxu0 %v120
  %219 = vmatpush.msra.mxu0 %v119
  %220 = vmatmul.f32.gmra.mxu0 %v202
  %v221 = vpop.f32.mrf.mxu0
  %v222 = vadd.f32 %v125, %v221
  %223 = vdwg.mxu0
  %v224 = vadd.f32 %v201, %v222
  %v225 = vxor.u32 %v224, 2147483648
  %v226 = vmul.f32 %v225, 1.442695
  %v227 = vpow.pop %v226
  %v228 = vadd.f32 %v227, 1.0
  %v229 = vrcp.pop %v228
  %v230 = vmul.f32 %v228, %v229
  %v231 = vsub.f32 1.0, %v230
  %v232 = vmul.f32 %v229, %v231
  %v233 = vadd.f32 %v229, %v232
  %vm234 = vweird.f32 %v228
  %vm235 = vweird.f32 %v229
  %vm236 = vmor %vm234, %vm235
  %v237 = vsel %vm236, %v229, %v233
  %v238 = vand.u32 2147483647, %v228
  %vm239 = vcmp.eq.f32.partialorder %v238, 8.507059e+37
  %v240 = vand.u32 %v228, 2147483648
  %v241 = vor.u32 1.1754944e-38, %v240
  %v242 = vsel %vm239, %v241, %v237
  %v243 = vmul.f32 1.0, %v242
  %245 = vrot.lane.b32.xlu0 %v222, 64
  %v246 = vpop.permute.xlu0 %245
  %v248 = vmul.f32 %v243, %v246
  %250 = vrot.lane.b32.xlu0 %v248, 64
  %v251 = vpop.permute.xlu0 %250
  %v253 = vadd.f32 %v201, %v251
  %v254 = vtanh.pop %v253
  %v255 = vsub.f32 1.0, %v243
  %257 = vrot.lane.b32.xlu0 %v254, 96
  %v258 = vpop.permute.xlu0 %257
  %v260 = vmul.f32 %v255, %v258
  %v261 = vmul.f32 %v243, %v194
  %v262 = vadd.f32 %v260, %v261
  %264 = vrot.lane.b32.xlu0 %v262, 96
  %v265 = vpop.permute.xlu0 %264
  %s267 = scalar_lea.vmem [#allocation3], 8
  %268 = vst.msk [vmem:[%s267] sm:$0xff] %vm129, %v265
  %s269 = scalar_lea.vmem [#allocation2], 16
  %v270 = vld [vmem:[%s269] sm:$0xff]
  %v271 = vsel %vm129, %v265, 0
  %273 = vmatpush.msra.mxu0 0.0
  %274 = vmatpush.msra.mxu0 0.0
  %275 = vmatpush.msra.mxu0 0.0
  %276 = vmatpush.msra.mxu0 0.0
  %277 = vmatpush.msra.mxu0 0.0
  %278 = vmatpush.msra.mxu0 0.0
  %279 = vmatpush.msra.mxu0 0.0
  %280 = vmatpush.msra.mxu0 0.0
  %281 = vmatpush.msra.mxu0 0.0
  %282 = vmatpush.msra.mxu0 0.0
  %283 = vmatpush.msra.mxu0 0.0
  %284 = vmatpush.msra.mxu0 0.0
  %285 = vmatpush.msra.mxu0 %v122
  %286 = vmatpush.msra.mxu0 %v121
  %287 = vmatpush.msra.mxu0 %v120
  %288 = vmatpush.msra.mxu0 %v119
  %289 = vmatmul.f32.gmra.mxu0 %v271
  %v290 = vpop.f32.mrf.mxu0
  %v291 = vadd.f32 %v125, %v290
  %292 = vdwg.mxu0
  %v293 = vadd.f32 %v270, %v291
  %v294 = vxor.u32 %v293, 2147483648
  %v295 = vmul.f32 %v294, 1.442695
  %v296 = vpow.pop %v295
  %v297 = vadd.f32 %v296, 1.0
  %v298 = vrcp.pop %v297
  %v299 = vmul.f32 %v297, %v298
  %v300 = vsub.f32 1.0, %v299
  %v301 = vmul.f32 %v298, %v300
  %v302 = vadd.f32 %v298, %v301
  %vm303 = vweird.f32 %v297
  %vm304 = vweird.f32 %v298
  %vm305 = vmor %vm303, %vm304
  %v306 = vsel %vm305, %v298, %v302
  %v307 = vand.u32 2147483647, %v297
  %vm308 = vcmp.eq.f32.partialorder %v307, 8.507059e+37
  %v309 = vand.u32 %v297, 2147483648
  %v310 = vor.u32 1.1754944e-38, %v309
  %v311 = vsel %vm308, %v310, %v306
  %v312 = vmul.f32 1.0, %v311
  %314 = vrot.lane.b32.xlu0 %v291, 64
  %v315 = vpop.permute.xlu0 %314
  %v317 = vmul.f32 %v312, %v315
  %319 = vrot.lane.b32.xlu0 %v317, 64
  %v320 = vpop.permute.xlu0 %319
  %v322 = vadd.f32 %v270, %v320
  %v323 = vtanh.pop %v322
  %v324 = vsub.f32 1.0, %v312
  %326 = vrot.lane.b32.xlu0 %v323, 96
  %v327 = vpop.permute.xlu0 %326
  %v329 = vmul.f32 %v324, %v327
  %v330 = vmul.f32 %v312, %v262
  %v331 = vadd.f32 %v329, %v330
  %333 = vrot.lane.b32.xlu0 %v331, 96
  %v334 = vpop.permute.xlu0 %333
  %s336 = scalar_lea.vmem [#allocation3], 16
  %337 = vst.msk [vmem:[%s336] sm:$0xff] %vm129, %v334
  %s338 = scalar_lea.vmem [#allocation2], 24
  %v339 = vld [vmem:[%s338] sm:$0xff]
  %v340 = vsel %vm129, %v334, 0
  %342 = vmatpush.msra.mxu0 0.0
  %343 = vmatpush.msra.mxu0 0.0
  %344 = vmatpush.msra.mxu0 0.0
  %345 = vmatpush.msra.mxu0 0.0
  %346 = vmatpush.msra.mxu0 0.0
  %347 = vmatpush.msra.mxu0 0.0
  %348 = vmatpush.msra.mxu0 0.0
  %349 = vmatpush.msra.mxu0 0.0
  %350 = vmatpush.msra.mxu0 0.0
  %351 = vmatpush.msra.mxu0 0.0
  %352 = vmatpush.msra.mxu0 0.0
  %353 = vmatpush.msra.mxu0 0.0
  %354 = vmatpush.msra.mxu0 %v122
  %355 = vmatpush.msra.mxu0 %v121
  %356 = vmatpush.msra.mxu0 %v120
  %357 = vmatpush.msra.mxu0 %v119
  %358 = vmatmul.f32.gmra.mxu0 %v340
  %v359 = vpop.f32.mrf.mxu0
  %v360 = vadd.f32 %v125, %v359
  %361 = vdwg.mxu0
  %v362 = vadd.f32 %v339, %v360
  %v363 = vxor.u32 %v362, 2147483648
  %v364 = vmul.f32 %v363, 1.442695
  %v365 = vpow.pop %v364
  %v366 = vadd.f32 %v365, 1.0
  %v367 = vrcp.pop %v366
  %v368 = vmul.f32 %v366, %v367
  %v369 = vsub.f32 1.0, %v368
  %v370 = vmul.f32 %v367, %v369
  %v371 = vadd.f32 %v367, %v370
  %vm372 = vweird.f32 %v366
  %vm373 = vweird.f32 %v367
  %vm374 = vmor %vm372, %vm373
  %v375 = vsel %vm374, %v367, %v371
  %v376 = vand.u32 2147483647, %v366
  %vm377 = vcmp.eq.f32.partialorder %v376, 8.507059e+37
  %v378 = vand.u32 %v366, 2147483648
  %v379 = vor.u32 1.1754944e-38, %v378
  %v380 = vsel %vm377, %v379, %v375
  %v381 = vmul.f32 1.0, %v380
  %383 = vrot.lane.b32.xlu0 %v360, 64
  %v384 = vpop.permute.xlu0 %383
  %v386 = vmul.f32 %v381, %v384
  %388 = vrot.lane.b32.xlu0 %v386, 64
  %v389 = vpop.permute.xlu0 %388
  %v391 = vadd.f32 %v339, %v389
  %v392 = vtanh.pop %v391
  %v393 = vsub.f32 1.0, %v381
  %395 = vrot.lane.b32.xlu0 %v392, 96
  %v396 = vpop.permute.xlu0 %395
  %v398 = vmul.f32 %v393, %v396
  %v399 = vmul.f32 %v381, %v331
  %v400 = vadd.f32 %v398, %v399
  %402 = vrot.lane.b32.xlu0 %v400, 96
  %v403 = vpop.permute.xlu0 %402
  %s405 = scalar_lea.vmem [#allocation3], 24
  %406 = vst.msk [vmem:[%s405] sm:$0xff] %vm129, %v403
  %s407 = scalar_lea.vmem [#allocation2], 32
  %v408 = vld [vmem:[%s407] sm:$0xff]
  %v409 = vsel %vm129, %v403, 0
  %411 = vmatpush.msra.mxu0 0.0
  %412 = vmatpush.msra.mxu0 0.0
  %413 = vmatpush.msra.mxu0 0.0
  %414 = vmatpush.msra.mxu0 0.0
  %415 = vmatpush.msra.mxu0 0.0
  %416 = vmatpush.msra.mxu0 0.0
  %417 = vmatpush.msra.mxu0 0.0
  %418 = vmatpush.msra.mxu0 0.0
  %419 = vmatpush.msra.mxu0 0.0
  %420 = vmatpush.msra.mxu0 0.0
  %421 = vmatpush.msra.mxu0 0.0
  %422 = vmatpush.msra.mxu0 0.0
  %423 = vmatpush.msra.mxu0 %v122
  %424 = vmatpush.msra.mxu0 %v121
  %425 = vmatpush.msra.mxu0 %v120
  %426 = vmatpush.msra.mxu0 %v119
  %427 = vmatmul.f32.gmra.mxu0 %v409
  %v428 = vpop.f32.mrf.mxu0
  %v429 = vadd.f32 %v125, %v428
  %430 = vdwg.mxu0
  %v431 = vadd.f32 %v408, %v429
  %v432 = vxor.u32 %v431, 2147483648
  %v433 = vmul.f32 %v432, 1.442695
  %v434 = vpow.pop %v433
  %v435 = vadd.f32 %v434, 1.0
  %v436 = vrcp.pop %v435
  %v437 = vmul.f32 %v435, %v436
  %v438 = vsub.f32 1.0, %v437
  %v439 = vmul.f32 %v436, %v438
  %v440 = vadd.f32 %v436, %v439
  %vm441 = vweird.f32 %v435
  %vm442 = vweird.f32 %v436
  %vm443 = vmor %vm441, %vm442
  %v444 = vsel %vm443, %v436, %v440
  %v445 = vand.u32 2147483647, %v435
  %vm446 = vcmp.eq.f32.partialorder %v445, 8.507059e+37
  %v447 = vand.u32 %v435, 2147483648
  %v448 = vor.u32 1.1754944e-38, %v447
  %v449 = vsel %vm446, %v448, %v444
  %v450 = vmul.f32 1.0, %v449
  %452 = vrot.lane.b32.xlu0 %v429, 64
  %v453 = vpop.permute.xlu0 %452
  %v455 = vmul.f32 %v450, %v453
  %457 = vrot.lane.b32.xlu0 %v455, 64
  %v458 = vpop.permute.xlu0 %457
  %v460 = vadd.f32 %v408, %v458
  %v461 = vtanh.pop %v460
  %v462 = vsub.f32 1.0, %v450
  %464 = vrot.lane.b32.xlu0 %v461, 96
  %v465 = vpop.permute.xlu0 %464
  %v467 = vmul.f32 %v462, %v465
  %v468 = vmul.f32 %v450, %v400
  %v469 = vadd.f32 %v467, %v468
  %471 = vrot.lane.b32.xlu0 %v469, 96
  %v472 = vpop.permute.xlu0 %471
  %s474 = scalar_lea.vmem [#allocation3], 32
  %475 = vst.msk [vmem:[%s474] sm:$0xff] %vm129, %v472
  %s476 = scalar_lea.vmem [#allocation2], 40
  %v477 = vld [vmem:[%s476] sm:$0xff]
  %v478 = vsel %vm129, %v472, 0
  %480 = vmatpush.msra.mxu0 0.0
  %481 = vmatpush.msra.mxu0 0.0
  %482 = vmatpush.msra.mxu0 0.0
  %483 = vmatpush.msra.mxu0 0.0
  %484 = vmatpush.msra.mxu0 0.0
  %485 = vmatpush.msra.mxu0 0.0
  %486 = vmatpush.msra.mxu0 0.0
  %487 = vmatpush.msra.mxu0 0.0
  %488 = vmatpush.msra.mxu0 0.0
  %489 = vmatpush.msra.mxu0 0.0
  %490 = vmatpush.msra.mxu0 0.0
  %491 = vmatpush.msra.mxu0 0.0
  %492 = vmatpush.msra.mxu0 %v122
  %493 = vmatpush.msra.mxu0 %v121
  %494 = vmatpush.msra.mxu0 %v120
  %495 = vmatpush.msra.mxu0 %v119
  %496 = vmatmul.f32.gmra.mxu0 %v478
  %v497 = vpop.f32.mrf.mxu0
  %v498 = vadd.f32 %v125, %v497
  %499 = vdwg.mxu0
  %v500 = vadd.f32 %v477, %v498
  %v501 = vxor.u32 %v500, 2147483648
  %v502 = vmul.f32 %v501, 1.442695
  %v503 = vpow.pop %v502
  %v504 = vadd.f32 %v503, 1.0
  %v505 = vrcp.pop %v504
  %v506 = vmul.f32 %v504, %v505
  %v507 = vsub.f32 1.0, %v506
  %v508 = vmul.f32 %v505, %v507
  %v509 = vadd.f32 %v505, %v508
  %vm510 = vweird.f32 %v504
  %vm511 = vweird.f32 %v505
  %vm512 = vmor %vm510, %vm511
  %v513 = vsel %vm512, %v505, %v509
  %v514 = vand.u32 2147483647, %v504
  %vm515 = vcmp.eq.f32.partialorder %v514, 8.507059e+37
  %v516 = vand.u32 %v504, 2147483648
  %v517 = vor.u32 1.1754944e-38, %v516
  %v518 = vsel %vm515, %v517, %v513
  %v519 = vmul.f32 1.0, %v518
  %521 = vrot.lane.b32.xlu0 %v498, 64
  %v522 = vpop.permute.xlu0 %521
  %v524 = vmul.f32 %v519, %v522
  %526 = vrot.lane.b32.xlu0 %v524, 64
  %v527 = vpop.permute.xlu0 %526
  %v529 = vadd.f32 %v477, %v527
  %v530 = vtanh.pop %v529
  %v531 = vsub.f32 1.0, %v519
  %533 = vrot.lane.b32.xlu0 %v530, 96
  %v534 = vpop.permute.xlu0 %533
  %v536 = vmul.f32 %v531, %v534
  %v537 = vmul.f32 %v519, %v469
  %v538 = vadd.f32 %v536, %v537
  %540 = vrot.lane.b32.xlu0 %v538, 96
  %v541 = vpop.permute.xlu0 %540
  %s543 = scalar_lea.vmem [#allocation3], 40
  %544 = vst.msk [vmem:[%s543] sm:$0xff] %vm129, %v541
  %s545 = scalar_lea.vmem [#allocation2], 48
  %v546 = vld [vmem:[%s545] sm:$0xff]
  %v547 = vsel %vm129, %v541, 0
  %549 = vmatpush.msra.mxu0 0.0
  %550 = vmatpush.msra.mxu0 0.0
  %551 = vmatpush.msra.mxu0 0.0
  %552 = vmatpush.msra.mxu0 0.0
  %553 = vmatpush.msra.mxu0 0.0
  %554 = vmatpush.msra.mxu0 0.0
  %555 = vmatpush.msra.mxu0 0.0
  %556 = vmatpush.msra.mxu0 0.0
  %557 = vmatpush.msra.mxu0 0.0
  %558 = vmatpush.msra.mxu0 0.0
  %559 = vmatpush.msra.mxu0 0.0
  %560 = vmatpush.msra.mxu0 0.0
  %561 = vmatpush.msra.mxu0 %v122
  %562 = vmatpush.msra.mxu0 %v121
  %563 = vmatpush.msra.mxu0 %v120
  %564 = vmatpush.msra.mxu0 %v119
  %565 = vmatmul.f32.gmra.mxu0 %v547
  %v566 = vpop.f32.mrf.mxu0
  %v567 = vadd.f32 %v125, %v566
  %568 = vdwg.mxu0
  %v569 = vadd.f32 %v546, %v567
  %v570 = vxor.u32 %v569, 2147483648
  %v571 = vmul.f32 %v570, 1.442695
  %v572 = vpow.pop %v571
  %v573 = vadd.f32 %v572, 1.0
  %v574 = vrcp.pop %v573
  %v575 = vmul.f32 %v573, %v574
  %v576 = vsub.f32 1.0, %v575
  %v577 = vmul.f32 %v574, %v576
  %v578 = vadd.f32 %v574, %v577
  %vm579 = vweird.f32 %v573
  %vm580 = vweird.f32 %v574
  %vm581 = vmor %vm579, %vm580
  %v582 = vsel %vm581, %v574, %v578
  %v583 = vand.u32 2147483647, %v573
  %vm584 = vcmp.eq.f32.partialorder %v583, 8.507059e+37
  %v585 = vand.u32 %v573, 2147483648
  %v586 = vor.u32 1.1754944e-38, %v585
  %v587 = vsel %vm584, %v586, %v582
  %v588 = vmul.f32 1.0, %v587
  %590 = vrot.lane.b32.xlu0 %v567, 64
  %v591 = vpop.permute.xlu0 %590
  %v593 = vmul.f32 %v588, %v591
  %595 = vrot.lane.b32.xlu0 %v593, 64
  %v596 = vpop.permute.xlu0 %595
  %v598 = vadd.f32 %v546, %v596
  %v599 = vtanh.pop %v598
  %v600 = vsub.f32 1.0, %v588
  %602 = vrot.lane.b32.xlu0 %v599, 96
  %v603 = vpop.permute.xlu0 %602
  %v605 = vmul.f32 %v600, %v603
  %v606 = vmul.f32 %v588, %v538
  %v607 = vadd.f32 %v605, %v606
  %609 = vrot.lane.b32.xlu0 %v607, 96
  %v610 = vpop.permute.xlu0 %609
  %s612 = scalar_lea.vmem [#allocation3], 48
  %613 = vst.msk [vmem:[%s612] sm:$0xff] %vm129, %v610
  %s614 = scalar_lea.vmem [#allocation2], 56
  %v615 = vld [vmem:[%s614] sm:$0xff]
  %v616 = vsel %vm129, %v610, 0
  %618 = vmatpush.msra.mxu0 0.0
  %619 = vmatpush.msra.mxu0 0.0
  %620 = vmatpush.msra.mxu0 0.0
  %621 = vmatpush.msra.mxu0 0.0
  %622 = vmatpush.msra.mxu0 0.0
  %623 = vmatpush.msra.mxu0 0.0
  %624 = vmatpush.msra.mxu0 0.0
  %625 = vmatpush.msra.mxu0 0.0
  %626 = vmatpush.msra.mxu0 0.0
  %627 = vmatpush.msra.mxu0 0.0
  %628 = vmatpush.msra.mxu0 0.0
  %629 = vmatpush.msra.mxu0 0.0
  %630 = vmatpush.msra.mxu0 %v122
  %631 = vmatpush.msra.mxu0 %v121
  %632 = vmatpush.msra.mxu0 %v120
  %633 = vmatpush.msra.mxu0 %v119
  %634 = vmatmul.f32.gmra.mxu0 %v616
  %v635 = vpop.f32.mrf.mxu0
  %v636 = vadd.f32 %v125, %v635
  %637 = vdwg.mxu0
  %v638 = vadd.f32 %v615, %v636
  %v639 = vxor.u32 %v638, 2147483648
  %v640 = vmul.f32 %v639, 1.442695
  %v641 = vpow.pop %v640
  %v642 = vadd.f32 %v641, 1.0
  %v643 = vrcp.pop %v642
  %v644 = vmul.f32 %v642, %v643
  %v645 = vsub.f32 1.0, %v644
  %v646 = vmul.f32 %v643, %v645
  %v647 = vadd.f32 %v643, %v646
  %vm648 = vweird.f32 %v642
  %vm649 = vweird.f32 %v643
  %vm650 = vmor %vm648, %vm649
  %v651 = vsel %vm650, %v643, %v647
  %v652 = vand.u32 2147483647, %v642
  %vm653 = vcmp.eq.f32.partialorder %v652, 8.507059e+37
  %v654 = vand.u32 %v642, 2147483648
  %v655 = vor.u32 1.1754944e-38, %v654
  %v656 = vsel %vm653, %v655, %v651
  %v657 = vmul.f32 1.0, %v656
  %659 = vrot.lane.b32.xlu0 %v636, 64
  %v660 = vpop.permute.xlu0 %659
  %v662 = vmul.f32 %v657, %v660
  %664 = vrot.lane.b32.xlu0 %v662, 64
  %v665 = vpop.permute.xlu0 %664
  %v667 = vadd.f32 %v615, %v665
  %v668 = vtanh.pop %v667
  %v669 = vsub.f32 1.0, %v657
  %671 = vrot.lane.b32.xlu0 %v668, 96
  %v672 = vpop.permute.xlu0 %671
  %v674 = vmul.f32 %v669, %v672
  %v675 = vmul.f32 %v657, %v607
  %v676 = vadd.f32 %v674, %v675
  %678 = vrot.lane.b32.xlu0 %v676, 96
  %v679 = vpop.permute.xlu0 %678
  %s681 = scalar_lea.vmem [#allocation3], 56
  %682 = vst.msk [vmem:[%s681] sm:$0xff] %vm129, %v679
  %683 = vst.msk [vmem:[%s9] sm:$0xff] %vm129, %v679
  %v684 = vld [vmem:[#allocation3] sm:$0xff]
  %v685 = vld [vmem:[#allocation3 + $0x8] sm:$0xff]
  %v686 = vld [vmem:[#allocation3 + $0x10] sm:$0xff]
  %v687 = vld [vmem:[#allocation3 + $0x18] sm:$0xff]
  %v688 = vld [vmem:[#allocation3 + $0x20] sm:$0xff]
  %v689 = vld [vmem:[#allocation3 + $0x28] sm:$0xff]
  %v690 = vld [vmem:[#allocation3 + $0x30] sm:$0xff]
  %v691 = vld [vmem:[#allocation3 + $0x38] sm:$0xff]
  %v692 = vld [vmem:[%s6] sm:$0xff]
  %v693 = vld [vmem:[%s6 + $0x8] sm:$0xff]
  %v694 = vld [vmem:[%s6 + $0x10] sm:$0xff]
  %v695 = vld [vmem:[%s6 + $0x18] sm:$0xff]
  %v696 = vld [vmem:[%s7] sm:$0x1]
  %v698 = vperm.slane %v696, 0
  %v701 = vsel %vm129, %v684, 0
  %v704 = vsel %vm129, %v685, 0
  %v707 = vsel %vm129, %v686, 0
  %v710 = vsel %vm129, %v687, 0
  %v713 = vsel %vm129, %v688, 0
  %v716 = vsel %vm129, %v689, 0
  %v719 = vsel %vm129, %v690, 0
  %v722 = vsel %vm129, %v691, 0
  %724 = vmatpush.msra.mxu0 0.0
  %725 = vmatpush.msra.mxu0 0.0
  %726 = vmatpush.msra.mxu0 0.0
  %727 = vmatpush.msra.mxu0 0.0
  %728 = vmatpush.msra.mxu0 0.0
  %729 = vmatpush.msra.mxu0 0.0
  %730 = vmatpush.msra.mxu0 0.0
  %731 = vmatpush.msra.mxu0 0.0
  %732 = vmatpush.msra.mxu0 0.0
  %733 = vmatpush.msra.mxu0 0.0
  %734 = vmatpush.msra.mxu0 0.0
  %735 = vmatpush.msra.mxu0 0.0
  %736 = vmatpush.msra.mxu0 %v695
  %737 = vmatpush.msra.mxu0 %v694
  %738 = vmatpush.msra.mxu0 %v693
  %739 = vmatpush.msra.mxu0 %v692
  %740 = vmatmul.f32.gmra.mxu0 %v701
  %v741 = vpop.f32.mrf.mxu0
  %v742 = vadd.f32 %v698, %v741
  %743 = vmatmul.f32.gmra.mxu0 %v704
  %v744 = vpop.f32.mrf.mxu0
  %v745 = vadd.f32 %v698, %v744
  %746 = vmatmul.f32.gmra.mxu0 %v707
  %v747 = vpop.f32.mrf.mxu0
  %v748 = vadd.f32 %v698, %v747
  %749 = vmatmul.f32.gmra.mxu0 %v710
  %v750 = vpop.f32.mrf.mxu0
  %v751 = vadd.f32 %v698, %v750
  %752 = vmatmul.f32.gmra.mxu0 %v713
  %v753 = vpop.f32.mrf.mxu0
  %v754 = vadd.f32 %v698, %v753
  %755 = vmatmul.f32.gmra.mxu0 %v716
  %v756 = vpop.f32.mrf.mxu0
  %v757 = vadd.f32 %v698, %v756
  %758 = vmatmul.f32.gmra.mxu0 %v719
  %v759 = vpop.f32.mrf.mxu0
  %v760 = vadd.f32 %v698, %v759
  %761 = vmatmul.f32.gmra.mxu0 %v722
  %v762 = vpop.f32.mrf.mxu0
  %v763 = vadd.f32 %v698, %v762
  %764 = vdwg.mxu0
  %765 = vst [vmem:[%s8] sm:$0xff] %v742
  %766 = vst [vmem:[%s8 + $0x8] sm:$0xff] %v745
  %767 = vst [vmem:[%s8 + $0x10] sm:$0xff] %v748
  %768 = vst [vmem:[%s8 + $0x18] sm:$0xff] %v751
  %769 = vst [vmem:[%s8 + $0x20] sm:$0xff] %v754
  %770 = vst [vmem:[%s8 + $0x28] sm:$0xff] %v757
  %771 = vst [vmem:[%s8 + $0x30] sm:$0xff] %v760
  %772 = vst [vmem:[%s8 + $0x38] sm:$0xff] %v763
  // Predicated region
  $region34: #{gru_fc_forward.1} parent=0 // pred_check
    _
  $region35: #{gru_fc_forward.1} parent=0 // pred_check_branch
    %774 = sbr.rel (0) target = $region37
  $region36: #{gru_fc_forward.1} parent=0 // pred_region
    _
  $region37: #{gru_fc_forward.1} parent=0 // pred_fallthru
    _
  // Predicated region
  $region38: #{gru_fc_forward.1} parent=0 // pred_check
    _
  $region39: #{gru_fc_forward.1} parent=0 // pred_check_branch
    %776 = sbr.rel (0) target = $region41
  $region40: #{gru_fc_forward.1} parent=0 // pred_region
    _
  $region41: #{gru_fc_forward.1} parent=0 // pred_fallthru
    _
  // Predicated region
  $region42: #{gru_fc_forward.1} parent=0 // pred_check
    _
  $region43: #{gru_fc_forward.1} parent=0 // pred_check_branch
    %778 = sbr.rel (0) target = $region45
  $region44: #{gru_fc_forward.1} parent=0 // pred_region
    _
  $region45: #{gru_fc_forward.1} parent=0 // pred_fallthru
    _
  // Predicated region
  $region46: #{gru_fc_forward.1} parent=0 // pred_check
    _
  $region47: #{gru_fc_forward.1} parent=0 // pred_check_branch
    %780 = sbr.rel (0) target = $region49
  $region48: #{gru_fc_forward.1} parent=0 // pred_region
    _
  $region49: #{gru_fc_forward.1} parent=0 // pred_fallthru
    _

</llo_original>
